<compile_context>
chip_gen: v6e
topology: v6e:2x2x1
jax: 0.10.0
libtpu: 0.0.40
codegen_flags: <defaults>
</compile_context>

<pallas_src>
import math

import jax
import jax.numpy as jnp
from jax.experimental import pallas as pl
from jax.experimental.pallas import tpu as pltpu


def _copy_kernel(x_ref, o_ref):
    # Pure identity copy on a lane-dense tile; no in-kernel reshape (avoids any
    # hidden VMEM relayout).
    o_ref[...] = x_ref[...]


# Lane-dense widths to try (largest first; >=1024 preferred, 128 minimum).
_LANE_CANDIDATES = (2048, 1024, 512, 256, 128)
# ~2 MiB per block: amortizes the ~0.35 us per-grid-step overhead while keeping
# (in + out) x 2 pipeline buffers well under the 16/32 MiB default scoped VMEM
# on v5e/v6e/v7x.
_TARGET_BLOCK_BYTES = 2 * 1024 * 1024


def pallas_squeeze(x: jax.Array) -> jax.Array:
    """Equivalent of torch.Tensor.squeeze(): drop all size-1 dimensions."""
    in_shape = x.shape
    out_shape = tuple(d for d in in_shape if d != 1)

    if len(out_shape) == 0:
        # Degenerate all-singleton shape -> scalar: metadata-only.
        return x.reshape(())

    total = math.prod(in_shape)

    # Pick the widest lane-dense K (multiple of 128) that divides the total
    # element count. If none exists, the squeeze is still just a free reshape.
    K = next((c for c in _LANE_CANDIDATES if total % c == 0), 0)
    if K == 0:
        # No lane-dense 2D tiling possible; squeeze is metadata-only anyway.
        return x.reshape(out_shape)

    M = total // K
    x2 = x.reshape(M, K)  # free (row-major) — this *is* the squeeze

    # Rows per block: target ~2 MiB, aligned to the sublane packing of the dtype
    # (8 rows for 32-bit, 16 for bf16, 32 for int8) so stores stay unmasked.
    itemsize = x2.dtype.itemsize
    sublane = max(8, 32 // max(1, itemsize))
    bytes_per_row = K * itemsize
    rows_per_block = max(1, _TARGET_BLOCK_BYTES // bytes_per_row)
    if rows_per_block >= M:
        bm = M  # single full-extent block (always satisfies the (8,128) rule)
    else:
        bm = max(sublane, (rows_per_block // sublane) * sublane)

    grid = (pl.cdiv(M, bm),)

    y2 = pl.pallas_call(
        _copy_kernel,
        out_shape=jax.ShapeDtypeStruct((M, K), x2.dtype),
        grid=grid,
        in_specs=[pl.BlockSpec((bm, K), lambda i: (i, 0))],
        out_specs=pl.BlockSpec((bm, K), lambda i: (i, 0)),
        compiler_params=pltpu.CompilerParams(
            dimension_semantics=("parallel",)),
    )(x2)

    # Free metadata reshape back to the squeezed shape.
    return y2.reshape(out_shape)


if __name__ == "__main__":
    key = jax.random.PRNGKey(0)

    # Small input with singleton dims so squeeze() actually does something:
    # (2, 1, 16, 1, 16) --squeeze--> (2, 16, 16)
    x = jax.random.normal(key, (2, 1, 16, 1, 16), dtype=jnp.float32)
    y = pallas_squeeze(x)
    jax.block_until_ready(y)
    ref = jnp.squeeze(x)
    assert y.shape == ref.shape, (y.shape, ref.shape)
    assert y.dtype == ref.dtype
    assert jnp.array_equal(y, ref), "value mismatch vs jnp.squeeze reference"

    # A second, larger shape exercising the lane-dense 2D tiling path:
    # (8, 1, 64, 1, 256) --squeeze--> (8, 64, 256)
    x_big = jax.random.normal(key, (8, 1, 64, 1, 256), dtype=jnp.float32)
    y_big = pallas_squeeze(x_big)
    jax.block_until_ready(y_big)
    ref_big = jnp.squeeze(x_big)
    assert y_big.shape == ref_big.shape, (y_big.shape, ref_big.shape)
    assert jnp.array_equal(y_big, ref_big), "value mismatch (large case)"

    # Fallback path (element count not a multiple of 128): pure metadata reshape.
    x_odd = jax.random.normal(key, (3, 1, 5), dtype=jnp.float32)
    y_odd = pallas_squeeze(x_odd)
    jax.block_until_ready(y_odd)
    assert y_odd.shape == (3, 5)
    assert jnp.array_equal(y_odd, jnp.squeeze(x_odd))

    print("KERNEL_OK")
</pallas_src>

<mosaic_0001>
module attributes {stable_mosaic.version = 11 : i64} {
  func.func @_copy_kernel(%arg0: i32, %arg1: memref<1x512xf32, #tpu.memory_space<vmem>>, %arg2: memref<1x512xf32, #tpu.memory_space<vmem>>) attributes {dimension_semantics = [#tpu.dimension_semantics<parallel>], iteration_bounds = array<i64: 1>, scalar_prefetch = 0 : i64, scratch_operands = 0 : i64, tpu.core_type = #tpu.core_type<tc>, window_params = [{transform_indices = @transform_0, window_bounds = array<i64: 1, 512>}, {transform_indices = @transform_1, window_bounds = array<i64: 1, 512>}]} {
    %c0 = arith.constant 0 : index
    %c0_0 = arith.constant 0 : index
    %0 = vector.load %arg1[%c0, %c0_0] : memref<1x512xf32, #tpu.memory_space<vmem>>, vector<1x512xf32>
    %c0_1 = arith.constant 0 : index
    %c0_2 = arith.constant 0 : index
    %1 = vector.load %arg2[%c0_1, %c0_2] : memref<1x512xf32, #tpu.memory_space<vmem>>, vector<1x512xf32>
    tpu.vector_store %arg2[%c0_1, %c0_2], %0 {strides = array<i32>} : memref<1x512xf32, #tpu.memory_space<vmem>>, vector<1x512xf32>,
    return
  }
  func.func @transform_0(%arg0: i32) -> (i32, i32) {
    %c0_i32 = arith.constant 0 : i32
    %c0_i32_0 = arith.constant 0 : i32
    return %arg0, %c0_i32 : i32, i32
  }
  func.func @transform_1(%arg0: i32) -> (i32, i32) {
    %c0_i32 = arith.constant 0 : i32
    %c0_i32_0 = arith.constant 0 : i32
    return %arg0, %c0_i32 : i32, i32
  }
}

</mosaic_0001>

<llo_original>
// kernel: tpu_custom_call.1
$region0: #{tpu_custom_call.1}
  #allocation0 [shape = 'u32[]', space=smem, size = 0x4, offset = 0x4, fixed_abs, tag = 'smem constant byte address 0x4 - core index']
  #allocation1 [shape = 'u32[144,128]{1,0:T(1,128)}', space=vmem, size = 0x12000, scoped, tag = 'internal scratch']
  %s0 = inlined_call_operand.hbm [shape: f32[1,512], index: 0, kind: input, shape index: {}]
  %s1 = inlined_call_operand.hbm [shape: f32[1,512], index: 1, kind: output, shape index: {}]
  %s2 = sld [smem:[#allocation0]]
  $region18: #{tpu_custom_call.1} parent=0
    _
  %s4 = ssub.s32 1, %s2
  %s5 = scalar_select 0, %s4, %s2
  $region1: #{tpu_custom_call.1} parent=0
    #allocation2 [shape = 'u8[2048]{0}', space=vmem, size = 0x800, scoped, tag = 'input window, operand 0, single buffered']
    #allocation3 [shape = 's32[1]{0}', space=sflag, size = 0x4, scoped, tag = 'scoped memory for tpu_custom_call.1']
    #allocation4 [shape = 's32[1]{0}', space=sflag, size = 0x4, scoped, tag = 'scoped memory for tpu_custom_call.1']
    #allocation5 [shape = 'u8[2048]{0}', space=vmem, size = 0x800, scoped, tag = 'output window, operand 0, single buffered']
    %6 = vsyncpa [#allocation3], 0
    %7 = vsyncpa [#allocation4], 0
    // Predicated region
    $region2: #{tpu_custom_call.1} parent=1 // pred_check
      _
    $region3: #{tpu_custom_call.1} parent=1 // pred_check_branch
      %9 = sbr.rel (0) target = $region5
    $region4: #{tpu_custom_call.1} parent=1 // pred_region
      %s11 = ssub.s32 64, 64
      %12 = vsyncadd [#allocation3], %s11
      %s14 = sshll.u32 [#allocation2], 4
      %s15 = int_to_ptr.vmem [resolvable:$true] %s14
      %17 = dma.hbm_to_vmem [thread:$0]  %s0, 64, %s15, [#allocation3]
    $region5: #{tpu_custom_call.1} parent=1 // pred_fallthru
      _
    // Predicated region
    $region6: #{tpu_custom_call.1} parent=1 // pred_check
      _
    $region7: #{tpu_custom_call.1} parent=1 // pred_check_branch
      %19 = sbr.rel (0) target = $region9
    $region8: #{tpu_custom_call.1} parent=1 // pred_region
      %20 = dma.done [#allocation3], 64
    $region9: #{tpu_custom_call.1} parent=1 // pred_fallthru
      _
    %v21 = vld [vmem:[#allocation2] sm:$0xf]
    %v22 = vlaneseq
    %vm23 = vcmp.ge.s32.totalorder %v22, 0
    %vm24 = vcmp.lt.s32.totalorder %v22, 512
    %vm25 = vmand %vm23, %vm24
    %26 = vst.msk [vmem:[#allocation5] sm:$0xf] %vm25, %v21
    // Predicated region
    $region10: #{tpu_custom_call.1} parent=1 // pred_check
      _
    $region11: #{tpu_custom_call.1} parent=1 // pred_check_branch
      %28 = sbr.rel (0) target = $region13
    $region12: #{tpu_custom_call.1} parent=1 // pred_region
      %s30 = ssub.s32 64, 64
      %31 = vsyncadd [#allocation4], %s30
      %s33 = sshll.u32 [#allocation5], 4
      %s34 = int_to_ptr.vmem [resolvable:$true] %s33
      %36 = dma.vmem_to_hbm [thread:$0]  %s34, 64, %s1, [#allocation4]
    $region13: #{tpu_custom_call.1} parent=1 // pred_fallthru
      _
    // Predicated region
    $region14: #{tpu_custom_call.1} parent=1 // pred_check
      _
    $region15: #{tpu_custom_call.1} parent=1 // pred_check_branch
      %38 = sbr.rel (0) target = $region17
    $region16: #{tpu_custom_call.1} parent=1 // pred_region
      %39 = dma.done [#allocation4], 64
    $region17: #{tpu_custom_call.1} parent=1 // pred_fallthru
      _
    %40 = vsyncpa [#allocation3], 1
    %41 = vsyncpa [#allocation4], 1

</llo_original>
